<compile_context>
chip_gen: v7x
topology: tpu7x:2x2x1
jax: 0.10.0
libtpu: 0.0.40
codegen_flags: <defaults>
</compile_context>

<pallas_src>
import functools

import jax
import jax.numpy as jnp
from jax.experimental import pallas as pl
from jax.experimental.pallas import tpu as pltpu

_ROW_ALIGN = 32  # row-tile multiple: safe sublane tiling for f32/bf16/int8/bool blocks


def _cdiv(a, b):
    return -(-a // b)


def _round_up(x, m):
    return ((x + m - 1) // m) * m


def _tpu_config():
    """Return (vmem_capacity_bytes, tensorcores_per_chip) with conservative fallbacks."""
    vmem_bytes = 128 * 1024 * 1024
    num_tc = 1
    try:
        info = pltpu.get_tpu_info()
        try:
            vmem_bytes = max(int(info.vmem_capacity_bytes), 32 * 1024 * 1024)
        except Exception:
            pass
        for name in ("num_cores", "cores_per_chip", "tensorcores_per_chip", "num_tensorcores"):
            try:
                c = int(getattr(info, name))
                if c >= 1:
                    num_tc = c
                    break
            except Exception:
                pass
    except Exception:
        pass
    return vmem_bytes, num_tc


def _pick_tile_rows(n_rows, bytes_per_row, target_block_bytes, max_tile_rows=None):
    cap = (target_block_bytes // max(bytes_per_row, 1)) // _ROW_ALIGN * _ROW_ALIGN
    cap = max(_ROW_ALIGN, cap)
    if max_tile_rows is not None:
        cap = max(_ROW_ALIGN, min(cap, _round_up(max_tile_rows, _ROW_ALIGN)))
    if n_rows <= cap:
        return _round_up(n_rows, _ROW_ALIGN)
    return cap


def _focal_loss_kernel(x_ref, t_ref, out_ref, *, alpha, gamma, n_rows, tile_rows,
                       num_row_tiles, tiles_per_split, with_core_split,
                       ragged_tail, has_duplicates):
    # x_ref   : VMEM (tile_rows, D) logits (any float dtype; up-cast in vregs)
    # t_ref   : VMEM (tile_rows, D) targets in {0, 1} (any dtype; up-cast in vregs)
    # out_ref : VMEM (8, D) f32 partial-sum accumulator, resident across the
    #           reduction grid axis for this core-split
    if with_core_split:
        c = pl.program_id(0)       # CORE_PARALLEL / parallel leading axis
        i = pl.program_id(1)       # "arbitrary" row-tile reduction axis
        tile_idx = c * tiles_per_split + i
    else:
        i = pl.program_id(0)
        tile_idx = i

    @pl.when(i == 0)
    def _init():
        out_ref[...] = jnp.zeros_like(out_ref)

    x = x_ref[...].astype(jnp.float32)
    t = t_ref[...].astype(jnp.float32)

    # BCE-with-logits (stable softplus form) and pt = exp(-BCE), exactly as the reference:
    #   z = (2t-1)*x,  bce = softplus(-z) = max(-z, 0) + log1p(exp(-|x|)),  pt = exp(-bce)
    # pt via a second EUP exp instead of an exact sigmoid divide: no Newton-refinement
    # VALU ops, no select, and it mirrors the PyTorch formula bit-for-bit.
    z = (2.0 * t - 1.0) * x
    e = jnp.exp(-jnp.abs(x))                 # = exp(-|z|); never overflows
    bce = jnp.maximum(-z, 0.0) + jnp.log1p(e)
    pt = jnp.exp(-bce)

    # at = alpha[target] as a linear blend; alpha is a compile-time constant.
    at = alpha + (1.0 - 2.0 * alpha) * t     # t=0 -> alpha, t=1 -> 1-alpha

    one_minus_pt = 1.0 - pt
    if gamma == 2:                           # module default; static Python branch
        mod = one_minus_pt * one_minus_pt
    else:
        mod = one_minus_pt ** gamma
    f = at * mod * bce

    def _fold(vals):
        # (tile_rows, D) -> (tile_rows//8, 8, D) is a sublane-aligned split of the
        # row axis (pure view, no relayout); the axis-0 sum is cross-vreg VALU adds.
        return vals.reshape(tile_rows // 8, 8, -1).sum(axis=0)

    if not (ragged_tail or has_duplicates):
        # No padded rows and no duplicate tiles anywhere: zero masking work.
        out_ref[...] += _fold(f)
    else:
        # Only the last real tile (row tail) and clamped duplicate tiles need a mask;
        # interior tiles take the unmasked path.
        @pl.when(tile_idx < num_row_tiles - 1)
        def _interior():
            out_ref[...] += _fold(f)

        @pl.when(tile_idx >= num_row_tiles - 1)
        def _edge():
            row0 = tile_idx * tile_rows
            rows = row0 + jax.lax.broadcasted_iota(jnp.int32, (tile_rows, 1), 0)
            # Duplicate (clamped) tiles have row0 >= n_rows, so they mask to zero entirely.
            valid = rows < n_rows
            out_ref[...] += _fold(jnp.where(valid, f, 0.0))


def weighted_focal_loss(inputs, targets, alpha, *, gamma=2, max_tile_rows=None,
                        num_core_splits=None, input_buffering=None):
    """Pallas TPU implementation of WeightedFocalLoss.forward (returns scalar mean).

    targets may be bf16 / int8 / bool (values in {0,1}); logits may be f32 or bf16.
    """
    assert inputs.ndim == 2 and inputs.shape == targets.shape
    n_rows, d = inputs.shape
    alpha = float(alpha)  # module constructs alpha as a static constant

    vmem_bytes, num_tc = _tpu_config()
    if num_core_splits is None:
        num_core_splits = num_tc           # 1 on v5e/v6e, 2 on v7x
    num_core_splits = max(1, int(num_core_splits))

    bytes_per_row = d * (inputs.dtype.itemsize + targets.dtype.itemsize)
    target_block_bytes = max(1 << 20, vmem_bytes // 12)   # ~10.6 MiB on 128-MiB chips, ~5.3 MiB on v7x
    tile_rows = _pick_tile_rows(n_rows, bytes_per_row, target_block_bytes, max_tile_rows)
    num_row_tiles = _cdiv(n_rows, tile_rows)
    num_core_splits = min(num_core_splits, num_row_tiles)  # never split below one tile per core
    tiles_per_split = _cdiv(num_row_tiles, num_core_splits)
    with_core_split = num_core_splits > 1

    ragged_tail = (n_rows % tile_rows) != 0
    has_duplicates = with_core_split and (num_core_splits * tiles_per_split > num_row_tiles)

    kernel = functools.partial(
        _focal_loss_kernel,
        alpha=alpha, gamma=gamma, n_rows=n_rows, tile_rows=tile_rows,
        num_row_tiles=num_row_tiles, tiles_per_split=tiles_per_split,
        with_core_split=with_core_split,
        ragged_tail=ragged_tail, has_duplicates=has_duplicates)

    spec_kwargs = {}
    if input_buffering is not None:      # optional: Buffered(3) on v7x if DMA gap is visible
        spec_kwargs["pipeline_mode"] = pl.Buffered(int(input_buffering))

    if with_core_split:
        grid = (num_core_splits, tiles_per_split)
        def row_block(c, i):
            # Clamp fully-out-of-range tiles onto the last valid block; kernel masks them to 0.
            return (jnp.minimum(c * tiles_per_split + i, num_row_tiles - 1), 0)
        out_map = lambda c, i: (c, 0, 0)
        # Real per-TensorCore sharding when the split matches the core count.
        lead_sem = pltpu.CORE_PARALLEL if (num_tc > 1 and num_core_splits == num_tc) else pltpu.PARALLEL
        dim_sem = (lead_sem, pltpu.ARBITRARY)
    else:
        grid = (num_row_tiles,)
        def row_block(i):
            return (i, 0)
        out_map = lambda i: (0, 0, 0)
        dim_sem = (pltpu.ARBITRARY,)

    vmem_limit = int(min(vmem_bytes // 2, 64 * 1024 * 1024))   # 64 MiB on v5e/v6e, 32 MiB on v7x

    partial_sums = pl.pallas_call(
        kernel,
        out_shape=jax.ShapeDtypeStruct((num_core_splits, 8, d), jnp.float32),
        grid=grid,
        in_specs=[
            pl.BlockSpec((tile_rows, d), row_block, **spec_kwargs),  # logits tile
            pl.BlockSpec((tile_rows, d), row_block, **spec_kwargs),  # targets tile (narrow dtype)
        ],
        out_specs=pl.BlockSpec((None, 8, d), out_map),
        compiler_params=pltpu.CompilerParams(
            dimension_semantics=dim_sem,
            vmem_limit_bytes=vmem_limit,
        ),
    )(inputs, targets)

    return jnp.sum(partial_sums, dtype=jnp.float32) / float(n_rows * d)


def _reference(inputs, targets, alpha_scalar, gamma=2):
    # Pure-JAX reference mirroring the PyTorch forward exactly.
    x = inputs.astype(jnp.float32)
    t = targets.astype(jnp.float32)
    alpha = jnp.array([alpha_scalar, 1.0 - alpha_scalar], dtype=jnp.float32)
    bce = jnp.maximum(x, 0.0) - x * t + jnp.log1p(jnp.exp(-jnp.abs(x)))
    at = alpha[t.astype(jnp.int32)]
    pt = jnp.exp(-bce)
    return jnp.mean(at * (1.0 - pt) ** gamma * bce)


if __name__ == "__main__":
    ALPHA = 0.25  # module parameter -> self.alpha = [alpha, 1 - alpha]
    key = jax.random.PRNGKey(0)
    k1, k2, k3, k4, k5, k6 = jax.random.split(key, 6)

    # Case 1: tiny (batch, classes) shape, f32 logits + bf16 targets, auto config.
    x1 = jax.random.normal(k1, (8, 128), dtype=jnp.float32)
    t1 = jax.random.bernoulli(k2, p=0.3, shape=(8, 128)).astype(jnp.bfloat16)
    loss1 = jax.block_until_ready(weighted_focal_loss(x1, t1, ALPHA))
    ref1 = _reference(x1, t1, ALPHA)
    assert jnp.allclose(loss1, ref1, rtol=1e-4, atol=1e-6), (loss1, ref1)

    # Case 2: ragged row count, int8 targets (narrow-dtype contract), forced small tiles
    # and a forced 2-way split to exercise multi-tile accumulation, the tail mask and
    # the clamped duplicate-tile mask even on single-TensorCore chips.
    x2 = jax.random.normal(k3, (300, 256), dtype=jnp.float32)
    t2 = jax.random.bernoulli(k4, p=0.3, shape=(300, 256)).astype(jnp.int8)
    loss2 = jax.block_until_ready(
        weighted_focal_loss(x2, t2, ALPHA, max_tile_rows=64, num_core_splits=2))
    ref2 = _reference(x2, t2, ALPHA)
    assert jnp.allclose(loss2, ref2, rtol=1e-4, atol=1e-6), (loss2, ref2)

    # Case 3: bf16 logits (half the HBM bytes), exact tile fit -> unmasked fast path only.
    x3 = jax.random.normal(k5, (64, 128), dtype=jnp.bfloat16)
    t3 = jax.random.bernoulli(k6, p=0.3, shape=(64, 128)).astype(jnp.bfloat16)
    loss3 = jax.block_until_ready(weighted_focal_loss(x3, t3, ALPHA))
    ref3 = _reference(x3, t3, ALPHA)
    assert jnp.allclose(loss3, ref3, rtol=1e-4, atol=1e-6), (loss3, ref3)

    print("KERNEL_OK")
</pallas_src>

<mosaic_0001>
module attributes {stable_mosaic.version = 11 : i64} {
  func.func @_focal_loss_kernel(%arg0: i32, %arg1: memref<32x128xf32, #tpu.memory_space<vmem>>, %arg2: memref<32x128xbf16, #tpu.memory_space<vmem>>, %arg3: memref<1x8x128xf32, #tpu.memory_space<vmem>>) attributes {dimension_semantics = [#tpu.dimension_semantics<arbitrary>], iteration_bounds = array<i64: 1>, scalar_prefetch = 0 : i64, scratch_operands = 0 : i64, tpu.core_type = #tpu.core_type<tc>, window_params = [{transform_indices = @transform_0, window_bounds = array<i64: 32, 128>}, {transform_indices = @transform_1, window_bounds = array<i64: 32, 128>}, {pipeline_mode = #tpu.pipeline_mode<synchronous>, transform_indices = @transform_2, window_bounds = array<i64: 1, 8, 128>}]} {
    %c0_i32 = arith.constant 0 : i32
    %0 = arith.cmpi eq, %arg0, %c0_i32 : i32
    %1 = arith.extui %0 : i1 to i32
    %c0_i32_0 = arith.constant 0 : i32
    %2 = arith.cmpi ne, %1, %c0_i32_0 : i32
    scf.if %2 {
      %cst_16 = arith.constant 0.000000e+00 : f32
      %39 = vector.broadcast %cst_16 : f32 to vector<8x128xf32>
      %c0_17 = arith.constant 0 : index
      %c0_18 = arith.constant 0 : index
      %c0_19 = arith.constant 0 : index
      %40 = vector.load %arg3[%c0_17, %c0_18, %c0_19] : memref<1x8x128xf32, #tpu.memory_space<vmem>>, vector<1x8x128xf32>
      %41 = vector.shape_cast %40 : vector<1x8x128xf32> to vector<8x128xf32>
      %42 = vector.shape_cast %39 : vector<8x128xf32> to vector<1x8x128xf32>
      tpu.vector_store %arg3[%c0_17, %c0_18, %c0_19], %42 {strides = array<i32>} : memref<1x8x128xf32, #tpu.memory_space<vmem>>, vector<1x8x128xf32>,
    } else {
    }
    %c0 = arith.constant 0 : index
    %c0_1 = arith.constant 0 : index
    %3 = vector.load %arg1[%c0, %c0_1] : memref<32x128xf32, #tpu.memory_space<vmem>>, vector<32x128xf32>
    %c0_2 = arith.constant 0 : index
    %c0_3 = arith.constant 0 : index
    %4 = vector.load %arg2[%c0_2, %c0_3] : memref<32x128xbf16, #tpu.memory_space<vmem>>, vector<32x128xbf16>
    %5 = arith.extf %4 : vector<32x128xbf16> to vector<32x128xf32>
    %cst = arith.constant 2.000000e+00 : f32
    %6 = vector.broadcast %cst : f32 to vector<32x128xf32>
    %7 = arith.mulf %6, %5 : vector<32x128xf32>
    %cst_4 = arith.constant 1.000000e+00 : f32
    %8 = vector.broadcast %cst_4 : f32 to vector<32x128xf32>
    %9 = arith.subf %7, %8 : vector<32x128xf32>
    %10 = arith.mulf %9, %3 : vector<32x128xf32>
    %11 = math.absf %3 : vector<32x128xf32>
    %cst_5 = arith.constant 0.000000e+00 : f32
    %12 = vector.broadcast %cst_5 : f32 to vector<32x128xf32>
    %13 = arith.subf %12, %11 : vector<32x128xf32>
    %14 = math.exp %13 : vector<32x128xf32>
    %cst_6 = arith.constant 0.000000e+00 : f32
    %15 = vector.broadcast %cst_6 : f32 to vector<32x128xf32>
    %16 = arith.subf %15, %10 : vector<32x128xf32>
    %cst_7 = arith.constant 0.000000e+00 : f32
    %17 = vector.broadcast %cst_7 : f32 to vector<32x128xf32>
    %18 = arith.maximumf %16, %17 : vector<32x128xf32>
    %19 = math.log1p %14 : vector<32x128xf32>
    %20 = arith.addf %18, %19 : vector<32x128xf32>
    %cst_8 = arith.constant 0.000000e+00 : f32
    %21 = vector.broadcast %cst_8 : f32 to vector<32x128xf32>
    %22 = arith.subf %21, %20 : vector<32x128xf32>
    %23 = math.exp %22 : vector<32x128xf32>
    %cst_9 = arith.constant 5.000000e-01 : f32
    %24 = vector.broadcast %cst_9 : f32 to vector<32x128xf32>
    %25 = arith.mulf %24, %5 : vector<32x128xf32>
    %cst_10 = arith.constant 2.500000e-01 : f32
    %26 = vector.broadcast %cst_10 : f32 to vector<32x128xf32>
    %27 = arith.addf %26, %25 : vector<32x128xf32>
    %cst_11 = arith.constant 1.000000e+00 : f32
    %28 = vector.broadcast %cst_11 : f32 to vector<32x128xf32>
    %29 = arith.subf %28, %23 : vector<32x128xf32>
    %30 = arith.mulf %29, %29 : vector<32x128xf32>
    %31 = arith.mulf %27, %30 : vector<32x128xf32>
    %32 = arith.mulf %31, %20 : vector<32x128xf32>
    %c0_i32_12 = arith.constant 0 : i32
    %33 = arith.cmpi slt, %arg0, %c0_i32_12 : i32
    %34 = arith.extui %33 : i1 to i32
    %c0_i32_13 = arith.constant 0 : i32
    %35 = arith.cmpi ne, %34, %c0_i32_13 : i32
    scf.if %35 {
      %c0_16 = arith.constant 0 : index
      %c0_17 = arith.constant 0 : index
      %c0_18 = arith.constant 0 : index
      %39 = vector.load %arg3[%c0_16, %c0_17, %c0_18] : memref<1x8x128xf32, #tpu.memory_space<vmem>>, vector<1x8x128xf32>
      %40 = vector.shape_cast %39 : vector<1x8x128xf32> to vector<8x128xf32>
      %41 = vector.shape_cast %32 : vector<32x128xf32> to vector<4x8x128xf32>
      %cst_19 = arith.constant dense<0.000000e+00> : vector<8x128xf32>
      %42 = vector.multi_reduction <add>, %41, %cst_19 [0] : vector<4x8x128xf32> to vector<8x128xf32>
      %43 = arith.addf %40, %42 : vector<8x128xf32>
      %c0_20 = arith.constant 0 : index
      %c0_21 = arith.constant 0 : index
      %c0_22 = arith.constant 0 : index
      %44 = vector.load %arg3[%c0_20, %c0_21, %c0_22] : memref<1x8x128xf32, #tpu.memory_space<vmem>>, vector<1x8x128xf32>
      %45 = vector.shape_cast %44 : vector<1x8x128xf32> to vector<8x128xf32>
      %46 = vector.shape_cast %43 : vector<8x128xf32> to vector<1x8x128xf32>
      tpu.vector_store %arg3[%c0_20, %c0_21, %c0_22], %46 {strides = array<i32>} : memref<1x8x128xf32, #tpu.memory_space<vmem>>, vector<1x8x128xf32>,
    } else {
    }
    %c0_i32_14 = arith.constant 0 : i32
    %36 = arith.cmpi sge, %arg0, %c0_i32_14 : i32
    %37 = arith.extui %36 : i1 to i32
    %c0_i32_15 = arith.constant 0 : i32
    %38 = arith.cmpi ne, %37, %c0_i32_15 : i32
    scf.if %38 {
      %c32_i32 = arith.constant 32 : i32
      %39 = arith.muli %arg0, %c32_i32 : i32
      %40 = tpu.iota {dimensions = array<i32: 0>} : vector<32x1xi32>
      %41 = vector.broadcast %39 : i32 to vector<32x1xi32>
      %42 = arith.addi %41, %40 : vector<32x1xi32>
      %c8_i32 = arith.constant 8 : i32
      %43 = vector.broadcast %c8_i32 : i32 to vector<32x1xi32>
      %44 = arith.cmpi slt, %42, %43 : vector<32x1xi32>
      %c0_16 = arith.constant 0 : index
      %c0_17 = arith.constant 0 : index
      %c0_18 = arith.constant 0 : index
      %45 = vector.load %arg3[%c0_16, %c0_17, %c0_18] : memref<1x8x128xf32, #tpu.memory_space<vmem>>, vector<1x8x128xf32>
      %46 = vector.shape_cast %45 : vector<1x8x128xf32> to vector<8x128xf32>
      %cst_19 = arith.constant 0.000000e+00 : f32
      %47 = vector.shape_cast %44 : vector<32x1xi1> to vector<32x1xi1>
      %48 = vector.broadcast %47 : vector<32x1xi1> to vector<32x128xi1>
      %49 = vector.broadcast %cst_19 : f32 to vector<32x128xf32>
      %50 = arith.select %48, %32, %49 : vector<32x128xi1>, vector<32x128xf32>
      %51 = vector.shape_cast %50 : vector<32x128xf32> to vector<4x8x128xf32>
      %cst_20 = arith.constant dense<0.000000e+00> : vector<8x128xf32>
      %52 = vector.multi_reduction <add>, %51, %cst_20 [0] : vector<4x8x128xf32> to vector<8x128xf32>
      %53 = arith.addf %46, %52 : vector<8x128xf32>
      %c0_21 = arith.constant 0 : index
      %c0_22 = arith.constant 0 : index
      %c0_23 = arith.constant 0 : index
      %54 = vector.load %arg3[%c0_21, %c0_22, %c0_23] : memref<1x8x128xf32, #tpu.memory_space<vmem>>, vector<1x8x128xf32>
      %55 = vector.shape_cast %54 : vector<1x8x128xf32> to vector<8x128xf32>
      %56 = vector.shape_cast %53 : vector<8x128xf32> to vector<1x8x128xf32>
      tpu.vector_store %arg3[%c0_21, %c0_22, %c0_23], %56 {strides = array<i32>} : memref<1x8x128xf32, #tpu.memory_space<vmem>>, vector<1x8x128xf32>,
    } else {
    }
    return
  }
  func.func @transform_0(%arg0: i32) -> (i32, i32) {
    %c0_i32 = arith.constant 0 : i32
    %c0_i32_0 = arith.constant 0 : i32
    return %arg0, %c0_i32 : i32, i32
  }
  func.func @transform_1(%arg0: i32) -> (i32, i32) {
    %c0_i32 = arith.constant 0 : i32
    %c0_i32_0 = arith.constant 0 : i32
    return %arg0, %c0_i32 : i32, i32
  }
  func.func @transform_2(%arg0: i32) -> (i32, i32, i32) {
    %c0_i32 = arith.constant 0 : i32
    %c0_i32_0 = arith.constant 0 : i32
    %c0_i32_1 = arith.constant 0 : i32
    %c0_i32_2 = arith.constant 0 : i32
    return %c0_i32, %c0_i32_0, %c0_i32_1 : i32, i32, i32
  }
}

</mosaic_0001>

<llo_original>
// kernel: tpu_custom_call.1
$region0: #{tpu_custom_call.1}
  #allocation0 [shape = 'u32[]', space=smem, size = 0x4, offset = 0x4, fixed_abs, tag = 'smem constant byte address 0x4 - core index']
  #allocation1 [shape = 'u32[144,128]{1,0:T(1,128)}', space=vmem, size = 0x12000, scoped, tag = 'internal scratch']
  %s0 = inlined_call_operand.hbm [shape: f32[8,128], index: 0, kind: input, shape index: {}]
  %s1 = inlined_call_operand.hbm [shape: bf16[8,128], index: 1, kind: input, shape index: {}]
  %s2 = inlined_call_operand.hbm [shape: f32[1,8,128], index: 2, kind: output, shape index: {}]
  %s3 = sld [smem:[#allocation0]]
  $region38: #{tpu_custom_call.1} parent=0
    _
  %s5 = ssub.s32 1, %s3
  %s6 = scalar_select 0, %s5, %s3
  $region1: #{tpu_custom_call.1} parent=0
    #allocation2 [shape = 'u8[16384]{0}', space=vmem, size = 0x4000, scoped, tag = 'input window, operand 0, single buffered']
    #allocation3 [shape = 's32[1]{0}', space=sflag, size = 0x4, scoped, tag = 'scoped memory for tpu_custom_call.1']
    #allocation4 [shape = 's32[1]{0}', space=sflag, size = 0x4, scoped, tag = 'scoped memory for tpu_custom_call.1']
    #allocation5 [shape = 'u8[8192]{0}', space=vmem, size = 0x2000, scoped, tag = 'input window, operand 1, single buffered']
    #allocation6 [shape = 's32[1]{0}', space=sflag, size = 0x4, scoped, tag = 'scoped memory for tpu_custom_call.1']
    #allocation7 [shape = 'u8[4096]{0}', space=vmem, size = 0x1000, scoped, tag = 'output window, operand 0, single buffered']
    %7 = vsyncpa [#allocation3], 0
    %8 = vsyncpa [#allocation6], 0
    %9 = vsyncpa [#allocation4], 0
    // Predicated region
    $region2: #{tpu_custom_call.1} parent=1 // pred_check
      _
    $region3: #{tpu_custom_call.1} parent=1 // pred_check_branch
      %11 = sbr.rel (0) target = $region5
    $region4: #{tpu_custom_call.1} parent=1 // pred_region
      %s13 = ssub.s32 512, 128
      %14 = vsyncadd [#allocation3], %s13
      %s15 = sshll.u32 [#allocation2], 4
      %s16 = int_to_ptr.vmem [resolvable:$true] %s15
      %21 = dma.hbm_to_vmem [thread:$0]  %s0, 128, %s16, [#allocation3], 128, 128, 8
    $region5: #{tpu_custom_call.1} parent=1 // pred_fallthru
      _
    // Predicated region
    $region6: #{tpu_custom_call.1} parent=1 // pred_check
      _
    $region7: #{tpu_custom_call.1} parent=1 // pred_check_branch
      %23 = sbr.rel (0) target = $region9
    $region8: #{tpu_custom_call.1} parent=1 // pred_region
      %s25 = ssub.s32 256, 64
      %26 = vsyncadd [#allocation6], %s25
      %s27 = sshll.u32 [#allocation5], 4
      %s28 = int_to_ptr.vmem [resolvable:$true] %s27
      %33 = dma.hbm_to_vmem [thread:$0]  %s1, 64, %s28, [#allocation6], 64, 64, 4
    $region9: #{tpu_custom_call.1} parent=1 // pred_fallthru
      _
    // Predicated region
    $region10: #{tpu_custom_call.1} parent=1 // pred_check
      _
    $region11: #{tpu_custom_call.1} parent=1 // pred_check_branch
      %35 = sbr.rel (0) target = $region13
    $region12: #{tpu_custom_call.1} parent=1 // pred_region
      %36 = dma.done [#allocation3], 512
    $region13: #{tpu_custom_call.1} parent=1 // pred_fallthru
      _
    // Predicated region
    $region14: #{tpu_custom_call.1} parent=1 // pred_check
      _
    $region15: #{tpu_custom_call.1} parent=1 // pred_check_branch
      %38 = sbr.rel (0) target = $region17
    $region16: #{tpu_custom_call.1} parent=1 // pred_region
      %39 = dma.done [#allocation6], 256
    $region17: #{tpu_custom_call.1} parent=1 // pred_fallthru
      _
    %p40 = scmp.eq.s32.totalorder 0, 0
    // Predicated region
    $region18: #{tpu_custom_call.1} parent=1 // pred_check
      %p41 = pneg %p40
    $region19: #{tpu_custom_call.1} parent=1 // pred_check_branch
      %43 = sbr.rel (%p41) target = $region21
    $region20: #{tpu_custom_call.1} parent=1 // pred_region
      %44 = vst [vmem:[#allocation7] sm:$0xff] 0.0
    $region21: #{tpu_custom_call.1} parent=1 // pred_fallthru
      _
    %v45 = vld [vmem:[#allocation2] sm:$0xff]
    %v46 = vld [vmem:[#allocation2 + $0x8] sm:$0xff]
    %v47 = vld [vmem:[#allocation2 + $0x10] sm:$0xff]
    %v48 = vld [vmem:[#allocation2 + $0x18] sm:$0xff]
    %v49 = vld [vmem:[#allocation5] sm:$0xf]
    %v50 = vld [vmem:[#allocation5 + $0x4] sm:$0xf]
    %v51 = vld [vmem:[#allocation5 + $0x8] sm:$0xf]
    %v52 = vld [vmem:[#allocation5 + $0xc] sm:$0xf]
    %v53 = vunpack.c.l.bf16 %v49
    %v54 = vunpack.c.l.bf16 %v50
    %v55 = vunpack.c.l.bf16 %v51
    %v56 = vunpack.c.l.bf16 %v52
    %v57 = vmul.f32 %v53, 2.0
    %v58 = vmul.f32 %v54, 2.0
    %v59 = vmul.f32 %v55, 2.0
    %v60 = vmul.f32 %v56, 2.0
    %v61 = vsub.f32 %v57, 1.0
    %v62 = vsub.f32 %v58, 1.0
    %v63 = vsub.f32 %v59, 1.0
    %v64 = vsub.f32 %v60, 1.0
    %v65 = vmul.f32 %v61, %v45
    %v66 = vmul.f32 %v62, %v46
    %v67 = vmul.f32 %v63, %v47
    %v68 = vmul.f32 %v64, %v48
    %v69 = vand.u32 2147483647, %v45
    %v70 = vand.u32 2147483647, %v46
    %v71 = vand.u32 2147483647, %v47
    %v72 = vand.u32 2147483647, %v48
    %v73 = vsub.f32 0.0, %v69
    %v74 = vsub.f32 0.0, %v70
    %v75 = vsub.f32 0.0, %v71
    %v76 = vsub.f32 0.0, %v72
    %v77 = vmul.f32 %v73, 1.442695
    %v78 = vpow.pop %v77
    %v79 = vmul.f32 %v74, 1.442695
    %v80 = vpow.pop %v79
    %v81 = vmul.f32 %v75, 1.442695
    %v82 = vpow.pop %v81
    %v83 = vmul.f32 %v76, 1.442695
    %v84 = vpow.pop %v83
    %v85 = vsub.f32 0.0, %v65
    %v86 = vsub.f32 0.0, %v66
    %v87 = vsub.f32 0.0, %v67
    %v88 = vsub.f32 0.0, %v68
    %v89 = vmax.f32 %v85, 0.0
    %v90 = vmax.f32 %v86, 0.0
    %v91 = vmax.f32 %v87, 0.0
    %v92 = vmax.f32 %v88, 0.0
    %v93 = vadd.f32 %v78, 1.0
    %v94 = vlog2.pop %v93
    %v95 = vmul.f32 %v94, 0.6931472
    %v96 = vmul.f32 -0.5, %v78
    %v97 = vadd.f32 %v96, 1.0
    %v98 = vmul.f32 %v97, %v78
    %v99 = vand.u32 2147483647, %v78
    %vm100 = vcmp.lt.f32.partialorder %v99, 0.0004427343
    %v101 = vsel %vm100, %v98, %v95
    %v102 = vadd.f32 %v80, 1.0
    %v103 = vlog2.pop %v102
    %v104 = vmul.f32 %v103, 0.6931472
    %v105 = vmul.f32 -0.5, %v80
    %v106 = vadd.f32 %v105, 1.0
    %v107 = vmul.f32 %v106, %v80
    %v108 = vand.u32 2147483647, %v80
    %vm109 = vcmp.lt.f32.partialorder %v108, 0.0004427343
    %v110 = vsel %vm109, %v107, %v104
    %v111 = vadd.f32 %v82, 1.0
    %v112 = vlog2.pop %v111
    %v113 = vmul.f32 %v112, 0.6931472
    %v114 = vmul.f32 -0.5, %v82
    %v115 = vadd.f32 %v114, 1.0
    %v116 = vmul.f32 %v115, %v82
    %v117 = vand.u32 2147483647, %v82
    %vm118 = vcmp.lt.f32.partialorder %v117, 0.0004427343
    %v119 = vsel %vm118, %v116, %v113
    %v120 = vadd.f32 %v84, 1.0
    %v121 = vlog2.pop %v120
    %v122 = vmul.f32 %v121, 0.6931472
    %v123 = vmul.f32 -0.5, %v84
    %v124 = vadd.f32 %v123, 1.0
    %v125 = vmul.f32 %v124, %v84
    %v126 = vand.u32 2147483647, %v84
    %vm127 = vcmp.lt.f32.partialorder %v126, 0.0004427343
    %v128 = vsel %vm127, %v125, %v122
    %v129 = vadd.f32 %v89, %v101
    %v130 = vadd.f32 %v90, %v110
    %v131 = vadd.f32 %v91, %v119
    %v132 = vadd.f32 %v92, %v128
    %v133 = vsub.f32 0.0, %v129
    %v134 = vsub.f32 0.0, %v130
    %v135 = vsub.f32 0.0, %v131
    %v136 = vsub.f32 0.0, %v132
    %v137 = vmul.f32 %v133, 1.442695
    %v138 = vpow.pop %v137
    %v139 = vmul.f32 %v134, 1.442695
    %v140 = vpow.pop %v139
    %v141 = vmul.f32 %v135, 1.442695
    %v142 = vpow.pop %v141
    %v143 = vmul.f32 %v136, 1.442695
    %v144 = vpow.pop %v143
    %v145 = vmul.f32 %v53, 0.5
    %v146 = vmul.f32 %v54, 0.5
    %v147 = vmul.f32 %v55, 0.5
    %v148 = vmul.f32 %v56, 0.5
    %v149 = vadd.f32 %v145, 0.25
    %v150 = vadd.f32 %v146, 0.25
    %v151 = vadd.f32 %v147, 0.25
    %v152 = vadd.f32 %v148, 0.25
    %v153 = vsub.f32 1.0, %v138
    %v154 = vsub.f32 1.0, %v140
    %v155 = vsub.f32 1.0, %v142
    %v156 = vsub.f32 1.0, %v144
    %v157 = vmul.f32 %v153, %v153
    %v158 = vmul.f32 %v154, %v154
    %v159 = vmul.f32 %v155, %v155
    %v160 = vmul.f32 %v156, %v156
    %v161 = vmul.f32 %v149, %v157
    %v162 = vmul.f32 %v150, %v158
    %v163 = vmul.f32 %v151, %v159
    %v164 = vmul.f32 %v152, %v160
    %v165 = vmul.f32 %v161, %v129
    %v166 = vmul.f32 %v162, %v130
    %v167 = vmul.f32 %v163, %v131
    %v168 = vmul.f32 %v164, %v132
    %p169 = scmp.lt.s32.totalorder 0, 0
    // Predicated region
    $region22: #{tpu_custom_call.1} parent=1 // pred_check
      %p170 = pneg %p169
    $region23: #{tpu_custom_call.1} parent=1 // pred_check_branch
      %172 = sbr.rel (%p170) target = $region25
    $region24: #{tpu_custom_call.1} parent=1 // pred_region
      %v173 = vld [vmem:[#allocation7] sm:$0xff]
      %v174 = vadd.f32 %v165, %v166
      %v175 = vadd.f32 %v174, %v167
      %v176 = vadd.f32 %v175, %v168
      %v177 = vadd.f32 %v173, %v176
      %178 = vst [vmem:[#allocation7] sm:$0xff] %v177
    $region25: #{tpu_custom_call.1} parent=1 // pred_fallthru
      _
    %p179 = scmp.ge.s32.totalorder 0, 0
    // Predicated region
    $region26: #{tpu_custom_call.1} parent=1 // pred_check
      %p180 = pneg %p179
    $region27: #{tpu_custom_call.1} parent=1 // pred_check_branch
      %182 = sbr.rel (%p180) target = $region29
    $region28: #{tpu_custom_call.1} parent=1 // pred_region
      %s183 = smul.u32 0, 32
      %v184 = vlaneseq
      %v185 = vshrl.u32 %v184, 7
      %v186 = vadd.s32 %v185, 8
      %v187 = vadd.s32 %v185, 16
      %v188 = vadd.s32 %v185, 24
      %v189 = vstv %s183
      %v190 = vadd.s32 %v189, %v185
      %v191 = vadd.s32 %v189, %v186
      %v192 = vadd.s32 %v189, %v187
      %v193 = vadd.s32 %v189, %v188
      %vm194 = vcmp.lt.s32.totalorder %v190, 8
      %vm195 = vcmp.lt.s32.totalorder %v191, 8
      %vm196 = vcmp.lt.s32.totalorder %v192, 8
      %vm197 = vcmp.lt.s32.totalorder %v193, 8
      %v198 = vld [vmem:[#allocation7] sm:$0xff]
      %v199 = vsel %vm194, 1, 0
      %v200 = vsel %vm195, 1, 0
      %v201 = vsel %vm196, 1, 0
      %v202 = vsel %vm197, 1, 0
      %vm203 = vcmp.eq.s32.totalorder %v199, 1
      %vm204 = vcmp.eq.s32.totalorder %v200, 1
      %vm205 = vcmp.eq.s32.totalorder %v201, 1
      %vm206 = vcmp.eq.s32.totalorder %v202, 1
      %v207 = vsel %vm203, %v165, 0.0
      %v208 = vsel %vm204, %v166, 0.0
      %v209 = vsel %vm205, %v167, 0.0
      %v210 = vsel %vm206, %v168, 0.0
      %v211 = vadd.f32 %v207, %v208
      %v212 = vadd.f32 %v211, %v209
      %v213 = vadd.f32 %v212, %v210
      %v214 = vadd.f32 %v198, %v213
      %215 = vst [vmem:[#allocation7] sm:$0xff] %v214
    $region29: #{tpu_custom_call.1} parent=1 // pred_fallthru
      _
    // Predicated region
    $region30: #{tpu_custom_call.1} parent=1 // pred_check
      _
    $region31: #{tpu_custom_call.1} parent=1 // pred_check_branch
      %217 = sbr.rel (0) target = $region33
    $region32: #{tpu_custom_call.1} parent=1 // pred_region
      %s219 = ssub.s32 128, 128
      %220 = vsyncadd [#allocation4], %s219
      %s222 = sshll.u32 [#allocation7], 4
      %s223 = int_to_ptr.vmem [resolvable:$true] %s222
      %225 = dma.vmem_to_hbm [thread:$0]  %s223, 128, %s2, [#allocation4]
    $region33: #{tpu_custom_call.1} parent=1 // pred_fallthru
      _
    // Predicated region
    $region34: #{tpu_custom_call.1} parent=1 // pred_check
      _
    $region35: #{tpu_custom_call.1} parent=1 // pred_check_branch
      %227 = sbr.rel (0) target = $region37
    $region36: #{tpu_custom_call.1} parent=1 // pred_region
      %228 = dma.done [#allocation4], 128
    $region37: #{tpu_custom_call.1} parent=1 // pred_fallthru
      _
    %229 = vsyncpa [#allocation3], 1
    %230 = vsyncpa [#allocation6], 1
    %231 = vsyncpa [#allocation4], 1

</llo_original>
